<compile_context>
chip_gen: v7x
topology: tpu7x:2x2x1
jax: 0.10.0
libtpu: 0.0.40
codegen_flags: <defaults>
</compile_context>

<pallas_src>
import functools
import math

import jax
import jax.numpy as jnp
from jax import lax
from jax.experimental import pallas as pl
from jax.experimental.pallas import tpu as pltpu


NUM_LAYERS = 8  # MappingNetwork: PixelNorm -> [WSLinear -> ReLU] x7 -> WSLinear


# --------------------------------------------------------------------------
# Kernels
# --------------------------------------------------------------------------
def _mapping_kernel_stacked(x_ref, w_ref, b_ref, out_ref, *,
                            num_layers, inv_in_dim):
    """All layers share one [L, d, d] weight stack (z_dim_total == w_dim)."""
    x = x_ref[...].astype(jnp.float32)
    # PixelNorm: x * rsqrt(mean(x^2) + 1e-8)    (rsqrt -> EUP slot, ~free)
    ssq = jnp.sum(x * x, axis=1, keepdims=True)
    h = x * lax.rsqrt(ssq * inv_in_dim + 1e-8)
    for i in range(num_layers):
        h = jnp.dot(h.astype(w_ref.dtype), w_ref[i],
                    preferred_element_type=jnp.float32) + b_ref[i:i + 1, :]
        if i < num_layers - 1:
            h = jnp.maximum(h, 0.0)
    out_ref[...] = h.astype(out_ref.dtype)


def _mapping_kernel_split(x_ref, w0_ref, wr_ref, b_ref, out_ref, *,
                          num_layers, inv_in_dim):
    """Fallback when the input dim differs from w_dim: layer 0 kept separate."""
    x = x_ref[...].astype(jnp.float32)
    ssq = jnp.sum(x * x, axis=1, keepdims=True)
    h = x * lax.rsqrt(ssq * inv_in_dim + 1e-8)
    h = jnp.dot(h.astype(w0_ref.dtype), w0_ref[...],
                preferred_element_type=jnp.float32) + b_ref[0:1, :]
    h = jnp.maximum(h, 0.0)
    for i in range(1, num_layers):
        h = jnp.dot(h.astype(wr_ref.dtype), wr_ref[i - 1],
                    preferred_element_type=jnp.float32) + b_ref[i:i + 1, :]
        if i < num_layers - 1:
            h = jnp.maximum(h, 0.0)
    out_ref[...] = h.astype(out_ref.dtype)


# --------------------------------------------------------------------------
# Parameter preparation (do once, reuse)
# --------------------------------------------------------------------------
def prepare_params(weights, biases, *, compute_dtype=jnp.float32):
    """PyTorch-style params -> kernel-friendly params.

    weights[i]: [out, in] ~ N(0,1); biases[i]: [out] or [1, out].
    WSLinear's sqrt(2/in) scale is folded in; weights stored as [in, out] in
    `compute_dtype` (fp32 for strict numerics; bf16 cuts MXU passes on
    v6e/v7x). Biases stay f32 (added after f32 accumulation) as [L, w_dim].
    """
    scaled = [(w * math.sqrt(2.0 / w.shape[1])).T.astype(compute_dtype)
              for w in weights]                               # each [in, out]
    b_stack = jnp.stack([jnp.reshape(b, (-1,)).astype(jnp.float32)
                         for b in biases], axis=0)            # [L, w_dim]
    in_dim = scaled[0].shape[0]
    w_dim = scaled[-1].shape[1]
    if in_dim == w_dim:
        return {"w_stack": jnp.stack(scaled, axis=0),         # [L, d, d]
                "b_stack": b_stack}
    return {"w0": scaled[0],                                  # [in_dim, w_dim]
            "w_rest": jnp.stack(scaled[1:], axis=0),          # [L-1, w, w]
            "b_stack": b_stack}


# --------------------------------------------------------------------------
# Forward wrapper
# --------------------------------------------------------------------------
def generator_forward(z, text_emb, params, *, block_b=256):
    """z: [B, latent_in], text_emb: [B, ...] -> out: [B, w_dim] float32."""
    B = z.shape[0]
    # Concat fused in the wrapper (tiny XLA concat); layer 0 then runs as a
    # single MXU pass on the stacked weights.
    x = jnp.concatenate([z.reshape(B, -1), text_emb.reshape(B, -1)],
                        axis=-1).astype(jnp.float32)
    b_stack = params["b_stack"]
    num_layers, w_dim = b_stack.shape
    in_dim = x.shape[1]

    if "w_stack" in params:
        kernel = functools.partial(_mapping_kernel_stacked,
                                   num_layers=num_layers,
                                   inv_in_dim=1.0 / float(in_dim))
        w_args = (params["w_stack"],)
    else:
        kernel = functools.partial(_mapping_kernel_split,
                                   num_layers=num_layers,
                                   inv_in_dim=1.0 / float(in_dim))
        w_args = (params["w0"], params["w_rest"])

    args = (x,) + w_args + (b_stack,)
    flops = 2 * B * w_dim * (in_dim + (num_layers - 1) * w_dim)
    bytes_accessed = (sum(int(a.size) * a.dtype.itemsize for a in args)
                      + B * w_dim * 4)
    cost = pl.CostEstimate(flops=flops, transcendentals=B,
                           bytes_accessed=bytes_accessed)
    out_shape = jax.ShapeDtypeStruct((B, w_dim), jnp.float32)

    if B <= block_b:
        # Latency-bound regime: no grid, everything resident in VMEM.
        vmem = pl.BlockSpec(memory_space=pltpu.MemorySpace.VMEM)
        return pl.pallas_call(
            kernel,
            out_shape=out_shape,
            in_specs=[vmem] * len(args),
            out_specs=vmem,
            cost_estimate=cost,
        )(*args)

    # Large batch: row-tiled grid; "parallel" lets v7x shard blocks across
    # both TensorCores (no effect on v5e/v6e, so it's free to add).
    grid = (pl.cdiv(B, block_b),)
    in_specs = [pl.BlockSpec((block_b, in_dim), lambda i: (i, 0))]
    for w in w_args:
        in_specs.append(
            pl.BlockSpec(w.shape, lambda i, nd=w.ndim: (0,) * nd))
    in_specs.append(pl.BlockSpec(b_stack.shape, lambda i: (0, 0)))
    out_specs = pl.BlockSpec((block_b, w_dim), lambda i: (i, 0))
    return pl.pallas_call(
        kernel,
        out_shape=out_shape,
        grid=grid,
        in_specs=in_specs,
        out_specs=out_specs,
        cost_estimate=cost,
        compiler_params=pltpu.CompilerParams(
            dimension_semantics=("parallel",)),
    )(*args)


# --------------------------------------------------------------------------
# Init + plain-JAX reference (mirrors the PyTorch forward)
# --------------------------------------------------------------------------
def init_params(key, z_dim, w_dim, num_layers=NUM_LAYERS):
    """Deterministic init matching the module: weights ~ N(0,1), biases = 0."""
    weights, biases = [], []
    in_dim = z_dim
    for _ in range(num_layers):
        key, sub = jax.random.split(key)
        weights.append(jax.random.normal(sub, (w_dim, in_dim),
                                         dtype=jnp.float32))
        biases.append(jnp.zeros((w_dim,), dtype=jnp.float32))
        in_dim = w_dim
    return weights, biases


def reference_forward(z, text_emb, weights, biases):
    B = z.shape[0]
    x = jnp.concatenate([z, text_emb.reshape(B, -1)],
                        axis=-1).astype(jnp.float32)
    x = x / jnp.sqrt(jnp.mean(x * x, axis=1, keepdims=True) + 1e-8)
    h = x
    for i, (w, b) in enumerate(zip(weights, biases)):
        scale = math.sqrt(2.0 / w.shape[1])
        h = (h * scale) @ w.T + b.reshape(1, -1)
        if i < len(weights) - 1:
            h = jnp.maximum(h, 0.0)
    return h


# --------------------------------------------------------------------------
if __name__ == "__main__":
    key = jax.random.PRNGKey(0)

    # Shapes implied by the forward: z: [B, latent_in], text_emb: [B, 4, 4].
    B, latent_in, latent_out = 8, 16, 32
    text_shape = (B, 4, 4)
    text_in = text_shape[1] * text_shape[2]          # 16 after flatten
    z_dim = latent_in + text_in                      # 32 == w_dim -> stacked

    kz, kt, kp = jax.random.split(key, 3)
    z = jax.random.normal(kz, (B, latent_in), dtype=jnp.float32)
    text_emb = jax.random.normal(kt, text_shape, dtype=jnp.float32)

    weights, biases = init_params(kp, z_dim, latent_out)
    ref = reference_forward(z, text_emb, weights, biases)

    # 1) fp32 operands, grid-less VMEM-resident path: strict 1e-4 check.
    params_f32 = prepare_params(weights, biases, compute_dtype=jnp.float32)
    out = jax.block_until_ready(generator_forward(z, text_emb, params_f32))
    assert out.shape == (B, latent_out)
    assert jnp.allclose(out, ref, atol=1e-4, rtol=1e-4), "fp32 mismatch"

    # 2) bf16 MXU operands with f32 accumulation (fewer MXU passes on
    #    v6e/v7x); looser tolerance as anticipated by the review.
    params_bf16 = prepare_params(weights, biases, compute_dtype=jnp.bfloat16)
    out_bf16 = jax.block_until_ready(
        generator_forward(z, text_emb, params_bf16))
    assert jnp.allclose(out_bf16, ref, atol=1e-1, rtol=1e-1), "bf16 mismatch"

    # 3) Large batch exercises the row-tiled "parallel" grid path
    #    (amortizes launch cost; can use both TCs on v7x).
    BL = 512
    kz2, kt2 = jax.random.split(kz)
    z_l = jax.random.normal(kz2, (BL, latent_in), dtype=jnp.float32)
    t_l = jax.random.normal(kt2, (BL,) + text_shape[1:], dtype=jnp.float32)
    out_l = jax.block_until_ready(
        generator_forward(z_l, t_l, params_f32, block_b=256))
    ref_l = reference_forward(z_l, t_l, weights, biases)
    assert out_l.shape == (BL, latent_out)
    assert jnp.allclose(out_l, ref_l, atol=1e-4, rtol=1e-4), "grid mismatch"

    print("KERNEL_OK")
</pallas_src>

<mosaic_0001>
module attributes {stable_mosaic.version = 11 : i64} {
  func.func @_mapping_kernel_stacked(%arg0: memref<8x32xf32, #tpu.memory_space<vmem>>, %arg1: memref<8x32x32xf32, #tpu.memory_space<vmem>>, %arg2: memref<8x32xf32, #tpu.memory_space<vmem>>, %arg3: memref<8x32xf32, #tpu.memory_space<vmem>>) attributes {dimension_semantics = [], scalar_prefetch = 0 : i64, scratch_operands = 0 : i64, tpu.core_type = #tpu.core_type<tc>} {
    %c0 = arith.constant 0 : index
    %c0_0 = arith.constant 0 : index
    %0 = vector.load %arg0[%c0, %c0_0] : memref<8x32xf32, #tpu.memory_space<vmem>>, vector<8x32xf32>
    %1 = arith.mulf %0, %0 : vector<8x32xf32>
    %cst = arith.constant dense<0.000000e+00> : vector<8xf32>
    %2 = vector.multi_reduction <add>, %1, %cst [1] : vector<8x32xf32> to vector<8xf32>
    %3 = vector.shape_cast %2 : vector<8xf32> to vector<8x1xf32>
    %cst_1 = arith.constant 3.125000e-02 : f32
    %4 = vector.broadcast %cst_1 : f32 to vector<8x1xf32>
    %5 = arith.mulf %3, %4 : vector<8x1xf32>
    %cst_2 = arith.constant 9.99999993E-9 : f32
    %6 = vector.broadcast %cst_2 : f32 to vector<8x1xf32>
    %7 = arith.addf %5, %6 : vector<8x1xf32>
    %8 = math.rsqrt %7 : vector<8x1xf32>
    %9 = vector.broadcast %8 : vector<8x1xf32> to vector<8x32xf32>
    %10 = arith.mulf %0, %9 : vector<8x32xf32>
    %c0_3 = arith.constant 0 : index
    %c0_4 = arith.constant 0 : index
    %c0_5 = arith.constant 0 : index
    %11 = vector.load %arg1[%c0_3, %c0_4, %c0_5] : memref<8x32x32xf32, #tpu.memory_space<vmem>>, vector<1x32x32xf32>
    %12 = vector.shape_cast %11 : vector<1x32x32xf32> to vector<32x32xf32>
    %cst_6 = arith.constant dense<0.000000e+00> : vector<8x32xf32>
    %13 = tpu.matmul %10, %12, %cst_6 {dimension_numbers = #tpu.dot_dimension_numbers<[1], [0], [0], [1], [0, 0, 1, 1], [], []>} : vector<8x32xf32>, vector<32x32xf32>, vector<8x32xf32> -> vector<8x32xf32>
    %c0_7 = arith.constant 0 : index
    %c0_8 = arith.constant 0 : index
    %14 = vector.load %arg2[%c0_7, %c0_8] : memref<8x32xf32, #tpu.memory_space<vmem>>, vector<1x32xf32>
    %15 = vector.broadcast %14 : vector<1x32xf32> to vector<8x32xf32>
    %16 = arith.addf %13, %15 : vector<8x32xf32>
    %cst_9 = arith.constant 0.000000e+00 : f32
    %17 = vector.broadcast %cst_9 : f32 to vector<8x32xf32>
    %18 = arith.maximumf %16, %17 : vector<8x32xf32>
    %c1 = arith.constant 1 : index
    %c0_10 = arith.constant 0 : index
    %c0_11 = arith.constant 0 : index
    %19 = vector.load %arg1[%c1, %c0_10, %c0_11] : memref<8x32x32xf32, #tpu.memory_space<vmem>>, vector<1x32x32xf32>
    %20 = vector.shape_cast %19 : vector<1x32x32xf32> to vector<32x32xf32>
    %cst_12 = arith.constant dense<0.000000e+00> : vector<8x32xf32>
    %21 = tpu.matmul %18, %20, %cst_12 {dimension_numbers = #tpu.dot_dimension_numbers<[1], [0], [0], [1], [0, 0, 1, 1], [], []>} : vector<8x32xf32>, vector<32x32xf32>, vector<8x32xf32> -> vector<8x32xf32>
    %c1_13 = arith.constant 1 : index
    %c0_14 = arith.constant 0 : index
    %22 = vector.load %arg2[%c1_13, %c0_14] : memref<8x32xf32, #tpu.memory_space<vmem>>, vector<1x32xf32>
    %23 = vector.broadcast %22 : vector<1x32xf32> to vector<8x32xf32>
    %24 = arith.addf %21, %23 : vector<8x32xf32>
    %cst_15 = arith.constant 0.000000e+00 : f32
    %25 = vector.broadcast %cst_15 : f32 to vector<8x32xf32>
    %26 = arith.maximumf %24, %25 : vector<8x32xf32>
    %c2 = arith.constant 2 : index
    %c0_16 = arith.constant 0 : index
    %c0_17 = arith.constant 0 : index
    %27 = vector.load %arg1[%c2, %c0_16, %c0_17] : memref<8x32x32xf32, #tpu.memory_space<vmem>>, vector<1x32x32xf32>
    %28 = vector.shape_cast %27 : vector<1x32x32xf32> to vector<32x32xf32>
    %cst_18 = arith.constant dense<0.000000e+00> : vector<8x32xf32>
    %29 = tpu.matmul %26, %28, %cst_18 {dimension_numbers = #tpu.dot_dimension_numbers<[1], [0], [0], [1], [0, 0, 1, 1], [], []>} : vector<8x32xf32>, vector<32x32xf32>, vector<8x32xf32> -> vector<8x32xf32>
    %c2_19 = arith.constant 2 : index
    %c0_20 = arith.constant 0 : index
    %30 = vector.load %arg2[%c2_19, %c0_20] : memref<8x32xf32, #tpu.memory_space<vmem>>, vector<1x32xf32>
    %31 = vector.broadcast %30 : vector<1x32xf32> to vector<8x32xf32>
    %32 = arith.addf %29, %31 : vector<8x32xf32>
    %cst_21 = arith.constant 0.000000e+00 : f32
    %33 = vector.broadcast %cst_21 : f32 to vector<8x32xf32>
    %34 = arith.maximumf %32, %33 : vector<8x32xf32>
    %c3 = arith.constant 3 : index
    %c0_22 = arith.constant 0 : index
    %c0_23 = arith.constant 0 : index
    %35 = vector.load %arg1[%c3, %c0_22, %c0_23] : memref<8x32x32xf32, #tpu.memory_space<vmem>>, vector<1x32x32xf32>
    %36 = vector.shape_cast %35 : vector<1x32x32xf32> to vector<32x32xf32>
    %cst_24 = arith.constant dense<0.000000e+00> : vector<8x32xf32>
    %37 = tpu.matmul %34, %36, %cst_24 {dimension_numbers = #tpu.dot_dimension_numbers<[1], [0], [0], [1], [0, 0, 1, 1], [], []>} : vector<8x32xf32>, vector<32x32xf32>, vector<8x32xf32> -> vector<8x32xf32>
    %c3_25 = arith.constant 3 : index
    %c0_26 = arith.constant 0 : index
    %38 = vector.load %arg2[%c3_25, %c0_26] : memref<8x32xf32, #tpu.memory_space<vmem>>, vector<1x32xf32>
    %39 = vector.broadcast %38 : vector<1x32xf32> to vector<8x32xf32>
    %40 = arith.addf %37, %39 : vector<8x32xf32>
    %cst_27 = arith.constant 0.000000e+00 : f32
    %41 = vector.broadcast %cst_27 : f32 to vector<8x32xf32>
    %42 = arith.maximumf %40, %41 : vector<8x32xf32>
    %c4 = arith.constant 4 : index
    %c0_28 = arith.constant 0 : index
    %c0_29 = arith.constant 0 : index
    %43 = vector.load %arg1[%c4, %c0_28, %c0_29] : memref<8x32x32xf32, #tpu.memory_space<vmem>>, vector<1x32x32xf32>
    %44 = vector.shape_cast %43 : vector<1x32x32xf32> to vector<32x32xf32>
    %cst_30 = arith.constant dense<0.000000e+00> : vector<8x32xf32>
    %45 = tpu.matmul %42, %44, %cst_30 {dimension_numbers = #tpu.dot_dimension_numbers<[1], [0], [0], [1], [0, 0, 1, 1], [], []>} : vector<8x32xf32>, vector<32x32xf32>, vector<8x32xf32> -> vector<8x32xf32>
    %c4_31 = arith.constant 4 : index
    %c0_32 = arith.constant 0 : index
    %46 = vector.load %arg2[%c4_31, %c0_32] : memref<8x32xf32, #tpu.memory_space<vmem>>, vector<1x32xf32>
    %47 = vector.broadcast %46 : vector<1x32xf32> to vector<8x32xf32>
    %48 = arith.addf %45, %47 : vector<8x32xf32>
    %cst_33 = arith.constant 0.000000e+00 : f32
    %49 = vector.broadcast %cst_33 : f32 to vector<8x32xf32>
    %50 = arith.maximumf %48, %49 : vector<8x32xf32>
    %c5 = arith.constant 5 : index
    %c0_34 = arith.constant 0 : index
    %c0_35 = arith.constant 0 : index
    %51 = vector.load %arg1[%c5, %c0_34, %c0_35] : memref<8x32x32xf32, #tpu.memory_space<vmem>>, vector<1x32x32xf32>
    %52 = vector.shape_cast %51 : vector<1x32x32xf32> to vector<32x32xf32>
    %cst_36 = arith.constant dense<0.000000e+00> : vector<8x32xf32>
    %53 = tpu.matmul %50, %52, %cst_36 {dimension_numbers = #tpu.dot_dimension_numbers<[1], [0], [0], [1], [0, 0, 1, 1], [], []>} : vector<8x32xf32>, vector<32x32xf32>, vector<8x32xf32> -> vector<8x32xf32>
    %c5_37 = arith.constant 5 : index
    %c0_38 = arith.constant 0 : index
    %54 = vector.load %arg2[%c5_37, %c0_38] : memref<8x32xf32, #tpu.memory_space<vmem>>, vector<1x32xf32>
    %55 = vector.broadcast %54 : vector<1x32xf32> to vector<8x32xf32>
    %56 = arith.addf %53, %55 : vector<8x32xf32>
    %cst_39 = arith.constant 0.000000e+00 : f32
    %57 = vector.broadcast %cst_39 : f32 to vector<8x32xf32>
    %58 = arith.maximumf %56, %57 : vector<8x32xf32>
    %c6 = arith.constant 6 : index
    %c0_40 = arith.constant 0 : index
    %c0_41 = arith.constant 0 : index
    %59 = vector.load %arg1[%c6, %c0_40, %c0_41] : memref<8x32x32xf32, #tpu.memory_space<vmem>>, vector<1x32x32xf32>
    %60 = vector.shape_cast %59 : vector<1x32x32xf32> to vector<32x32xf32>
    %cst_42 = arith.constant dense<0.000000e+00> : vector<8x32xf32>
    %61 = tpu.matmul %58, %60, %cst_42 {dimension_numbers = #tpu.dot_dimension_numbers<[1], [0], [0], [1], [0, 0, 1, 1], [], []>} : vector<8x32xf32>, vector<32x32xf32>, vector<8x32xf32> -> vector<8x32xf32>
    %c6_43 = arith.constant 6 : index
    %c0_44 = arith.constant 0 : index
    %62 = vector.load %arg2[%c6_43, %c0_44] : memref<8x32xf32, #tpu.memory_space<vmem>>, vector<1x32xf32>
    %63 = vector.broadcast %62 : vector<1x32xf32> to vector<8x32xf32>
    %64 = arith.addf %61, %63 : vector<8x32xf32>
    %cst_45 = arith.constant 0.000000e+00 : f32
    %65 = vector.broadcast %cst_45 : f32 to vector<8x32xf32>
    %66 = arith.maximumf %64, %65 : vector<8x32xf32>
    %c7 = arith.constant 7 : index
    %c0_46 = arith.constant 0 : index
    %c0_47 = arith.constant 0 : index
    %67 = vector.load %arg1[%c7, %c0_46, %c0_47] : memref<8x32x32xf32, #tpu.memory_space<vmem>>, vector<1x32x32xf32>
    %68 = vector.shape_cast %67 : vector<1x32x32xf32> to vector<32x32xf32>
    %cst_48 = arith.constant dense<0.000000e+00> : vector<8x32xf32>
    %69 = tpu.matmul %66, %68, %cst_48 {dimension_numbers = #tpu.dot_dimension_numbers<[1], [0], [0], [1], [0, 0, 1, 1], [], []>} : vector<8x32xf32>, vector<32x32xf32>, vector<8x32xf32> -> vector<8x32xf32>
    %c7_49 = arith.constant 7 : index
    %c0_50 = arith.constant 0 : index
    %70 = vector.load %arg2[%c7_49, %c0_50] : memref<8x32xf32, #tpu.memory_space<vmem>>, vector<1x32xf32>
    %71 = vector.broadcast %70 : vector<1x32xf32> to vector<8x32xf32>
    %72 = arith.addf %69, %71 : vector<8x32xf32>
    %c0_51 = arith.constant 0 : index
    %c0_52 = arith.constant 0 : index
    %73 = vector.load %arg3[%c0_51, %c0_52] : memref<8x32xf32, #tpu.memory_space<vmem>>, vector<8x32xf32>
    tpu.vector_store %arg3[%c0_51, %c0_52], %72 {strides = array<i32>} : memref<8x32xf32, #tpu.memory_space<vmem>>, vector<8x32xf32>,
    return
  }
}

</mosaic_0001>

<llo_original>
// kernel: tpu_custom_call.1
$region0: #{tpu_custom_call.1}
  #allocation0 [shape = 'u32[]', space=smem, size = 0x4, offset = 0x4, fixed_abs, tag = 'smem constant byte address 0x4 - core index']
  #allocation1 [shape = 'u32[144,128]{1,0:T(1,128)}', space=vmem, size = 0x12000, scoped, tag = 'internal scratch']
  %s0 = inlined_call_operand.hbm [shape: f32[8,32], index: 0, kind: input, shape index: {}]
  %s1 = inlined_call_operand.hbm [shape: f32[8,32,32], index: 1, kind: input, shape index: {}]
  %s2 = inlined_call_operand.hbm [shape: f32[8,32], index: 2, kind: input, shape index: {}]
  %s3 = inlined_call_operand.hbm [shape: f32[8,32], index: 3, kind: output, shape index: {}]
  %s4 = sld [smem:[#allocation0]]
  $region34: #{tpu_custom_call.1} parent=0
    _
  %s6 = ssub.s32 1, %s4
  %s7 = scalar_select 0, %s6, %s4
  $region1: #{tpu_custom_call.1} parent=0
    #allocation2 [shape = 'u8[4096]{0}', space=vmem, size = 0x1000, scoped, tag = 'input window, operand 0, single buffered']
    #allocation3 [shape = 's32[1]{0}', space=sflag, size = 0x4, scoped, tag = 'scoped memory for tpu_custom_call.1']
    #allocation4 [shape = 's32[1]{0}', space=sflag, size = 0x4, scoped, tag = 'scoped memory for tpu_custom_call.1']
    #allocation5 [shape = 'u8[131072]{0}', space=vmem, size = 0x20000, scoped, tag = 'input window, operand 1, single buffered']
    #allocation6 [shape = 's32[1]{0}', space=sflag, size = 0x4, scoped, tag = 'scoped memory for tpu_custom_call.1']
    #allocation7 [shape = 'u8[4096]{0}', space=vmem, size = 0x1000, scoped, tag = 'input window, operand 2, single buffered']
    #allocation8 [shape = 'u8[4096]{0}', space=vmem, size = 0x1000, scoped, tag = 'output window, operand 0, single buffered']
    %8 = vsyncpa [#allocation3], 0
    %9 = vsyncpa [#allocation6], 0
    %10 = vsyncpa [#allocation4], 0
    // Predicated region
    $region2: #{tpu_custom_call.1} parent=1 // pred_check
      _
    $region3: #{tpu_custom_call.1} parent=1 // pred_check_branch
      %12 = sbr.rel (0) target = $region5
    $region4: #{tpu_custom_call.1} parent=1 // pred_region
      %s14 = ssub.s32 128, 128
      %15 = vsyncadd [#allocation3], %s14
      %s17 = sshll.u32 [#allocation2], 4
      %s18 = int_to_ptr.vmem [resolvable:$true] %s17
      %20 = dma.hbm_to_vmem [thread:$0]  %s0, 128, %s18, [#allocation3]
    $region5: #{tpu_custom_call.1} parent=1 // pred_fallthru
      _
    // Predicated region
    $region6: #{tpu_custom_call.1} parent=1 // pred_check
      _
    $region7: #{tpu_custom_call.1} parent=1 // pred_check_branch
      %22 = sbr.rel (0) target = $region9
    $region8: #{tpu_custom_call.1} parent=1 // pred_region
      %s24 = ssub.s32 4096, 4096
      %25 = vsyncadd [#allocation6], %s24
      %s26 = sshll.u32 [#allocation5], 4
      %s27 = int_to_ptr.vmem [resolvable:$true] %s26
      %32 = dma.hbm_to_vmem [thread:$0]  %s1, 4096, %s27, [#allocation6], 128, 128, 8
    $region9: #{tpu_custom_call.1} parent=1 // pred_fallthru
      _
    // Predicated region
    $region10: #{tpu_custom_call.1} parent=1 // pred_check
      _
    $region11: #{tpu_custom_call.1} parent=1 // pred_check_branch
      %34 = sbr.rel (0) target = $region13
    $region12: #{tpu_custom_call.1} parent=1 // pred_region
      %s36 = ssub.s32 128, 128
      %37 = vsyncadd [#allocation6], %s36
      %s39 = sshll.u32 [#allocation7], 4
      %s40 = int_to_ptr.vmem [resolvable:$true] %s39
      %42 = dma.hbm_to_vmem [thread:$0]  %s2, 128, %s40, [#allocation6]
    $region13: #{tpu_custom_call.1} parent=1 // pred_fallthru
      _
    // Predicated region
    $region14: #{tpu_custom_call.1} parent=1 // pred_check
      _
    $region15: #{tpu_custom_call.1} parent=1 // pred_check_branch
      %44 = sbr.rel (0) target = $region17
    $region16: #{tpu_custom_call.1} parent=1 // pred_region
      %45 = dma.done [#allocation3], 128
    $region17: #{tpu_custom_call.1} parent=1 // pred_fallthru
      _
    // Predicated region
    $region18: #{tpu_custom_call.1} parent=1 // pred_check
      _
    $region19: #{tpu_custom_call.1} parent=1 // pred_check_branch
      %47 = sbr.rel (0) target = $region21
    $region20: #{tpu_custom_call.1} parent=1 // pred_region
      %48 = dma.done [#allocation6], 4096
    $region21: #{tpu_custom_call.1} parent=1 // pred_fallthru
      _
    // Predicated region
    $region22: #{tpu_custom_call.1} parent=1 // pred_check
      _
    $region23: #{tpu_custom_call.1} parent=1 // pred_check_branch
      %50 = sbr.rel (0) target = $region25
    $region24: #{tpu_custom_call.1} parent=1 // pred_region
      %51 = dma.done [#allocation6], 128
    $region25: #{tpu_custom_call.1} parent=1 // pred_fallthru
      _
    %v52 = vld [vmem:[#allocation2] sm:$0xff]
    %v53 = vmul.f32 %v52, %v52
    %vm54 = vcmask 261120
    %v55 = vsel %vm54, %v53, 0.0
    %56 = vadd.xlane.f32.xlu0 %v55
    %v57 = vpop.xlane.xlu0 %56
    %v58 = vmul.f32 %v57, 0.03125
    %v59 = vadd.f32 %v58, 1e-08
    %v60 = vrsqrt.pop %v59
    %v61 = vmul.f32 %v52, %v60
    %v62 = vld [vmem:[#allocation5] sm:$0xff]
    %v63 = vld [vmem:[#allocation5 + $0x8] sm:$0xff]
    %v64 = vld [vmem:[#allocation5 + $0x10] sm:$0xff]
    %v65 = vld [vmem:[#allocation5 + $0x18] sm:$0xff]
    %v66 = vld [vmem:[#allocation7] sm:$0x1]
    %v67 = vlaneseq
    %v68 = vshrl.u32 %v67, 7
    %v69 = vsub.s32 0, %v68
    %v70 = vrot.slane %v66, %v69
    %v72 = vsel %vm54, %v61, 0
    %74 = vmatprep.subr.mxu0 0.0
    %75 = vmatpush1.msra.mxu0 %v62
    %76 = vmatprep.subr.mxu0 0.0
    %77 = vmatpush1.msra.mxu0 %v63
    %78 = vmatprep.subr.mxu0 0.0
    %79 = vmatpush1.msra.mxu0 %v64
    %80 = vmatprep.subr.mxu0 0.0
    %81 = vmatpush1.msra.mxu0 %v65
    %82 = vmatprep.subr.mxu0 0.0
    %83 = vmatpush1.msra.mxu0 0.0
    %84 = vmatprep.subr.mxu0 0.0
    %85 = vmatpush1.msra.mxu0 0.0
    %86 = vmatprep.subr.mxu0 0.0
    %87 = vmatpush1.msra.mxu0 0.0
    %88 = vmatprep.subr.mxu0 0.0
    %89 = vmatpush1.msra.mxu0 0.0
    %90 = vmatprep.subr.mxu0 0.0
    %91 = vmatpush1.msra.mxu0 0.0
    %92 = vmatprep.subr.mxu0 0.0
    %93 = vmatpush1.msra.mxu0 0.0
    %94 = vmatprep.subr.mxu0 0.0
    %95 = vmatpush1.msra.mxu0 0.0
    %96 = vmatprep.subr.mxu0 0.0
    %97 = vmatpush1.msra.mxu0 0.0
    %98 = vmatprep.subr.mxu0 0.0
    %99 = vmatpush1.msra.mxu0 0.0
    %100 = vmatprep.subr.mxu0 0.0
    %101 = vmatpush1.msra.mxu0 0.0
    %102 = vmatprep.subr.mxu0 0.0
    %103 = vmatpush1.msra.mxu0 0.0
    %104 = vmatprep.subr.mxu0 0.0
    %105 = vmatpush1.msra.mxu0 0.0
    %106 = vmatprep.subr.mxu0 0.0
    %107 = vmatpush1.msra.mxu0 0.0
    %108 = vmatprep.subr.mxu0 0.0
    %109 = vmatpush1.msra.mxu0 0.0
    %110 = vmatprep.subr.mxu0 0.0
    %111 = vmatpush1.msra.mxu0 0.0
    %112 = vmatprep.subr.mxu0 0.0
    %113 = vmatpush1.msra.mxu0 0.0
    %114 = vmatprep.subr.mxu0 0.0
    %115 = vmatpush1.msra.mxu0 0.0
    %116 = vmatprep.subr.mxu0 0.0
    %117 = vmatpush1.msra.mxu0 0.0
    %118 = vmatprep.subr.mxu0 0.0
    %119 = vmatpush1.msra.mxu0 0.0
    %120 = vmatprep.subr.mxu0 0.0
    %121 = vmatpush1.msra.mxu0 0.0
    %122 = vmatprep.subr.mxu0 0.0
    %123 = vmatpush1.msra.mxu0 0.0
    %124 = vmatprep.subr.mxu0 0.0
    %125 = vmatpush1.msra.mxu0 0.0
    %126 = vmatprep.subr.mxu0 0.0
    %127 = vmatpush1.msra.mxu0 0.0
    %128 = vmatprep.subr.mxu0 0.0
    %129 = vmatpush1.msra.mxu0 0.0
    %130 = vmatprep.subr.mxu0 0.0
    %131 = vmatpush1.msra.mxu0 0.0
    %132 = vmatprep.subr.mxu0 0.0
    %133 = vmatpush1.msra.mxu0 0.0
    %134 = vmatprep.subr.mxu0 0.0
    %135 = vmatpush1.msra.mxu0 0.0
    %136 = vmatprep.subr.mxu0 0.0
    %137 = vmatpush1.msra.mxu0 0.0
    %138 = vmatprep.mubr.f32.mxu0 0.0
    %139 = vmatmul.mubr.f32.gmra.mrb[0].mxu0 %v72
    %v140 = vpop.f32.mrb[0].mxu0
    %v141 = vadd.f32 %v70, %v140
    %v142 = vpop.f32.mrb[0].mxu0
    %143 = vdwg.mxu0
    %v144 = vmax.f32 %v141, 0.0
    %s145 = scalar_lea.vmem [#allocation5], 32
    %v146 = vld [vmem:[%s145] sm:$0xff]
    %v147 = vld [vmem:[%s145 + $0x8] sm:$0xff]
    %v148 = vld [vmem:[%s145 + $0x10] sm:$0xff]
    %v149 = vld [vmem:[%s145 + $0x18] sm:$0xff]
    %v150 = vld [vmem:[#allocation7 + $0x1] sm:$0x1]
    %v151 = vlaneseq
    %v152 = vshrl.u32 %v151, 7
    %v153 = vsub.s32 0, %v152
    %v154 = vrot.slane %v150, %v153
    %v156 = vsel %vm54, %v144, 0
    %158 = vmatprep.subr.mxu0 0.0
    %159 = vmatpush1.msra.mxu0 %v146
    %160 = vmatprep.subr.mxu0 0.0
    %161 = vmatpush1.msra.mxu0 %v147
    %162 = vmatprep.subr.mxu0 0.0
    %163 = vmatpush1.msra.mxu0 %v148
    %164 = vmatprep.subr.mxu0 0.0
    %165 = vmatpush1.msra.mxu0 %v149
    %166 = vmatprep.subr.mxu0 0.0
    %167 = vmatpush1.msra.mxu0 0.0
    %168 = vmatprep.subr.mxu0 0.0
    %169 = vmatpush1.msra.mxu0 0.0
    %170 = vmatprep.subr.mxu0 0.0
    %171 = vmatpush1.msra.mxu0 0.0
    %172 = vmatprep.subr.mxu0 0.0
    %173 = vmatpush1.msra.mxu0 0.0
    %174 = vmatprep.subr.mxu0 0.0
    %175 = vmatpush1.msra.mxu0 0.0
    %176 = vmatprep.subr.mxu0 0.0
    %177 = vmatpush1.msra.mxu0 0.0
    %178 = vmatprep.subr.mxu0 0.0
    %179 = vmatpush1.msra.mxu0 0.0
    %180 = vmatprep.subr.mxu0 0.0
    %181 = vmatpush1.msra.mxu0 0.0
    %182 = vmatprep.subr.mxu0 0.0
    %183 = vmatpush1.msra.mxu0 0.0
    %184 = vmatprep.subr.mxu0 0.0
    %185 = vmatpush1.msra.mxu0 0.0
    %186 = vmatprep.subr.mxu0 0.0
    %187 = vmatpush1.msra.mxu0 0.0
    %188 = vmatprep.subr.mxu0 0.0
    %189 = vmatpush1.msra.mxu0 0.0
    %190 = vmatprep.subr.mxu0 0.0
    %191 = vmatpush1.msra.mxu0 0.0
    %192 = vmatprep.subr.mxu0 0.0
    %193 = vmatpush1.msra.mxu0 0.0
    %194 = vmatprep.subr.mxu0 0.0
    %195 = vmatpush1.msra.mxu0 0.0
    %196 = vmatprep.subr.mxu0 0.0
    %197 = vmatpush1.msra.mxu0 0.0
    %198 = vmatprep.subr.mxu0 0.0
    %199 = vmatpush1.msra.mxu0 0.0
    %200 = vmatprep.subr.mxu0 0.0
    %201 = vmatpush1.msra.mxu0 0.0
    %202 = vmatprep.subr.mxu0 0.0
    %203 = vmatpush1.msra.mxu0 0.0
    %204 = vmatprep.subr.mxu0 0.0
    %205 = vmatpush1.msra.mxu0 0.0
    %206 = vmatprep.subr.mxu0 0.0
    %207 = vmatpush1.msra.mxu0 0.0
    %208 = vmatprep.subr.mxu0 0.0
    %209 = vmatpush1.msra.mxu0 0.0
    %210 = vmatprep.subr.mxu0 0.0
    %211 = vmatpush1.msra.mxu0 0.0
    %212 = vmatprep.subr.mxu0 0.0
    %213 = vmatpush1.msra.mxu0 0.0
    %214 = vmatprep.subr.mxu0 0.0
    %215 = vmatpush1.msra.mxu0 0.0
    %216 = vmatprep.subr.mxu0 0.0
    %217 = vmatpush1.msra.mxu0 0.0
    %218 = vmatprep.subr.mxu0 0.0
    %219 = vmatpush1.msra.mxu0 0.0
    %220 = vmatprep.subr.mxu0 0.0
    %221 = vmatpush1.msra.mxu0 0.0
    %222 = vmatprep.mubr.f32.mxu0 0.0
    %223 = vmatmul.mubr.f32.gmra.mrb[0].mxu0 %v156
    %v224 = vpop.f32.mrb[0].mxu0
    %v225 = vadd.f32 %v154, %v224
    %v226 = vpop.f32.mrb[0].mxu0
    %227 = vdwg.mxu0
    %v228 = vmax.f32 %v225, 0.0
    %s229 = scalar_lea.vmem [#allocation5], 64
    %v230 = vld [vmem:[%s229] sm:$0xff]
    %v231 = vld [vmem:[%s229 + $0x8] sm:$0xff]
    %v232 = vld [vmem:[%s229 + $0x10] sm:$0xff]
    %v233 = vld [vmem:[%s229 + $0x18] sm:$0xff]
    %v234 = vld [vmem:[#allocation7 + $0x2] sm:$0x1]
    %v235 = vlaneseq
    %v236 = vshrl.u32 %v235, 7
    %v237 = vsub.s32 0, %v236
    %v238 = vrot.slane %v234, %v237
    %v240 = vsel %vm54, %v228, 0
    %242 = vmatprep.subr.mxu0 0.0
    %243 = vmatpush1.msra.mxu0 %v230
    %244 = vmatprep.subr.mxu0 0.0
    %245 = vmatpush1.msra.mxu0 %v231
    %246 = vmatprep.subr.mxu0 0.0
    %247 = vmatpush1.msra.mxu0 %v232
    %248 = vmatprep.subr.mxu0 0.0
    %249 = vmatpush1.msra.mxu0 %v233
    %250 = vmatprep.subr.mxu0 0.0
    %251 = vmatpush1.msra.mxu0 0.0
    %252 = vmatprep.subr.mxu0 0.0
    %253 = vmatpush1.msra.mxu0 0.0
    %254 = vmatprep.subr.mxu0 0.0
    %255 = vmatpush1.msra.mxu0 0.0
    %256 = vmatprep.subr.mxu0 0.0
    %257 = vmatpush1.msra.mxu0 0.0
    %258 = vmatprep.subr.mxu0 0.0
    %259 = vmatpush1.msra.mxu0 0.0
    %260 = vmatprep.subr.mxu0 0.0
    %261 = vmatpush1.msra.mxu0 0.0
    %262 = vmatprep.subr.mxu0 0.0
    %263 = vmatpush1.msra.mxu0 0.0
    %264 = vmatprep.subr.mxu0 0.0
    %265 = vmatpush1.msra.mxu0 0.0
    %266 = vmatprep.subr.mxu0 0.0
    %267 = vmatpush1.msra.mxu0 0.0
    %268 = vmatprep.subr.mxu0 0.0
    %269 = vmatpush1.msra.mxu0 0.0
    %270 = vmatprep.subr.mxu0 0.0
    %271 = vmatpush1.msra.mxu0 0.0
    %272 = vmatprep.subr.mxu0 0.0
    %273 = vmatpush1.msra.mxu0 0.0
    %274 = vmatprep.subr.mxu0 0.0
    %275 = vmatpush1.msra.mxu0 0.0
    %276 = vmatprep.subr.mxu0 0.0
    %277 = vmatpush1.msra.mxu0 0.0
    %278 = vmatprep.subr.mxu0 0.0
    %279 = vmatpush1.msra.mxu0 0.0
    %280 = vmatprep.subr.mxu0 0.0
    %281 = vmatpush1.msra.mxu0 0.0
    %282 = vmatprep.subr.mxu0 0.0
    %283 = vmatpush1.msra.mxu0 0.0
    %284 = vmatprep.subr.mxu0 0.0
    %285 = vmatpush1.msra.mxu0 0.0
    %286 = vmatprep.subr.mxu0 0.0
    %287 = vmatpush1.msra.mxu0 0.0
    %288 = vmatprep.subr.mxu0 0.0
    %289 = vmatpush1.msra.mxu0 0.0
    %290 = vmatprep.subr.mxu0 0.0
    %291 = vmatpush1.msra.mxu0 0.0
    %292 = vmatprep.subr.mxu0 0.0
    %293 = vmatpush1.msra.mxu0 0.0
    %294 = vmatprep.subr.mxu0 0.0
    %295 = vmatpush1.msra.mxu0 0.0
    %296 = vmatprep.subr.mxu0 0.0
    %297 = vmatpush1.msra.mxu0 0.0
    %298 = vmatprep.subr.mxu0 0.0
    %299 = vmatpush1.msra.mxu0 0.0
    %300 = vmatprep.subr.mxu0 0.0
    %301 = vmatpush1.msra.mxu0 0.0
    %302 = vmatprep.subr.mxu0 0.0
    %303 = vmatpush1.msra.mxu0 0.0
    %304 = vmatprep.subr.mxu0 0.0
    %305 = vmatpush1.msra.mxu0 0.0
    %306 = vmatprep.mubr.f32.mxu0 0.0
    %307 = vmatmul.mubr.f32.gmra.mrb[0].mxu0 %v240
    %v308 = vpop.f32.mrb[0].mxu0
    %v309 = vadd.f32 %v238, %v308
    %v310 = vpop.f32.mrb[0].mxu0
    %311 = vdwg.mxu0
    %v312 = vmax.f32 %v309, 0.0
    %s313 = scalar_lea.vmem [#allocation5], 96
    %v314 = vld [vmem:[%s313] sm:$0xff]
    %v315 = vld [vmem:[%s313 + $0x8] sm:$0xff]
    %v316 = vld [vmem:[%s313 + $0x10] sm:$0xff]
    %v317 = vld [vmem:[%s313 + $0x18] sm:$0xff]
    %v318 = vld [vmem:[#allocation7 + $0x3] sm:$0x1]
    %v319 = vlaneseq
    %v320 = vshrl.u32 %v319, 7
    %v321 = vsub.s32 0, %v320
    %v322 = vrot.slane %v318, %v321
    %v324 = vsel %vm54, %v312, 0
    %326 = vmatprep.subr.mxu0 0.0
    %327 = vmatpush1.msra.mxu0 %v314
    %328 = vmatprep.subr.mxu0 0.0
    %329 = vmatpush1.msra.mxu0 %v315
    %330 = vmatprep.subr.mxu0 0.0
    %331 = vmatpush1.msra.mxu0 %v316
    %332 = vmatprep.subr.mxu0 0.0
    %333 = vmatpush1.msra.mxu0 %v317
    %334 = vmatprep.subr.mxu0 0.0
    %335 = vmatpush1.msra.mxu0 0.0
    %336 = vmatprep.subr.mxu0 0.0
    %337 = vmatpush1.msra.mxu0 0.0
    %338 = vmatprep.subr.mxu0 0.0
    %339 = vmatpush1.msra.mxu0 0.0
    %340 = vmatprep.subr.mxu0 0.0
    %341 = vmatpush1.msra.mxu0 0.0
    %342 = vmatprep.subr.mxu0 0.0
    %343 = vmatpush1.msra.mxu0 0.0
    %344 = vmatprep.subr.mxu0 0.0
    %345 = vmatpush1.msra.mxu0 0.0
    %346 = vmatprep.subr.mxu0 0.0
    %347 = vmatpush1.msra.mxu0 0.0
    %348 = vmatprep.subr.mxu0 0.0
    %349 = vmatpush1.msra.mxu0 0.0
    %350 = vmatprep.subr.mxu0 0.0
    %351 = vmatpush1.msra.mxu0 0.0
    %352 = vmatprep.subr.mxu0 0.0
    %353 = vmatpush1.msra.mxu0 0.0
    %354 = vmatprep.subr.mxu0 0.0
    %355 = vmatpush1.msra.mxu0 0.0
    %356 = vmatprep.subr.mxu0 0.0
    %357 = vmatpush1.msra.mxu0 0.0
    %358 = vmatprep.subr.mxu0 0.0
    %359 = vmatpush1.msra.mxu0 0.0
    %360 = vmatprep.subr.mxu0 0.0
    %361 = vmatpush1.msra.mxu0 0.0
    %362 = vmatprep.subr.mxu0 0.0
    %363 = vmatpush1.msra.mxu0 0.0
    %364 = vmatprep.subr.mxu0 0.0
    %365 = vmatpush1.msra.mxu0 0.0
    %366 = vmatprep.subr.mxu0 0.0
    %367 = vmatpush1.msra.mxu0 0.0
    %368 = vmatprep.subr.mxu0 0.0
    %369 = vmatpush1.msra.mxu0 0.0
    %370 = vmatprep.subr.mxu0 0.0
    %371 = vmatpush1.msra.mxu0 0.0
    %372 = vmatprep.subr.mxu0 0.0
    %373 = vmatpush1.msra.mxu0 0.0
    %374 = vmatprep.subr.mxu0 0.0
    %375 = vmatpush1.msra.mxu0 0.0
    %376 = vmatprep.subr.mxu0 0.0
    %377 = vmatpush1.msra.mxu0 0.0
    %378 = vmatprep.subr.mxu0 0.0
    %379 = vmatpush1.msra.mxu0 0.0
    %380 = vmatprep.subr.mxu0 0.0
    %381 = vmatpush1.msra.mxu0 0.0
    %382 = vmatprep.subr.mxu0 0.0
    %383 = vmatpush1.msra.mxu0 0.0
    %384 = vmatprep.subr.mxu0 0.0
    %385 = vmatpush1.msra.mxu0 0.0
    %386 = vmatprep.subr.mxu0 0.0
    %387 = vmatpush1.msra.mxu0 0.0
    %388 = vmatprep.subr.mxu0 0.0
    %389 = vmatpush1.msra.mxu0 0.0
    %390 = vmatprep.mubr.f32.mxu0 0.0
    %391 = vmatmul.mubr.f32.gmra.mrb[0].mxu0 %v324
    %v392 = vpop.f32.mrb[0].mxu0
    %v393 = vadd.f32 %v322, %v392
    %v394 = vpop.f32.mrb[0].mxu0
    %395 = vdwg.mxu0
    %v396 = vmax.f32 %v393, 0.0
    %s397 = scalar_lea.vmem [#allocation5], 128
    %v398 = vld [vmem:[%s397] sm:$0xff]
    %v399 = vld [vmem:[%s397 + $0x8] sm:$0xff]
    %v400 = vld [vmem:[%s397 + $0x10] sm:$0xff]
    %v401 = vld [vmem:[%s397 + $0x18] sm:$0xff]
    %v402 = vld [vmem:[#allocation7 + $0x4] sm:$0x1]
    %v403 = vlaneseq
    %v404 = vshrl.u32 %v403, 7
    %v405 = vsub.s32 0, %v404
    %v406 = vrot.slane %v402, %v405
    %v408 = vsel %vm54, %v396, 0
    %410 = vmatprep.subr.mxu0 0.0
    %411 = vmatpush1.msra.mxu0 %v398
    %412 = vmatprep.subr.mxu0 0.0
    %413 = vmatpush1.msra.mxu0 %v399
    %414 = vmatprep.subr.mxu0 0.0
    %415 = vmatpush1.msra.mxu0 %v400
    %416 = vmatprep.subr.mxu0 0.0
    %417 = vmatpush1.msra.mxu0 %v401
    %418 = vmatprep.subr.mxu0 0.0
    %419 = vmatpush1.msra.mxu0 0.0
    %420 = vmatprep.subr.mxu0 0.0
    %421 = vmatpush1.msra.mxu0 0.0
    %422 = vmatprep.subr.mxu0 0.0
    %423 = vmatpush1.msra.mxu0 0.0
    %424 = vmatprep.subr.mxu0 0.0
    %425 = vmatpush1.msra.mxu0 0.0
    %426 = vmatprep.subr.mxu0 0.0
    %427 = vmatpush1.msra.mxu0 0.0
    %428 = vmatprep.subr.mxu0 0.0
    %429 = vmatpush1.msra.mxu0 0.0
    %430 = vmatprep.subr.mxu0 0.0
    %431 = vmatpush1.msra.mxu0 0.0
    %432 = vmatprep.subr.mxu0 0.0
    %433 = vmatpush1.msra.mxu0 0.0
    %434 = vmatprep.subr.mxu0 0.0
    %435 = vmatpush1.msra.mxu0 0.0
    %436 = vmatprep.subr.mxu0 0.0
    %437 = vmatpush1.msra.mxu0 0.0
    %438 = vmatprep.subr.mxu0 0.0
    %439 = vmatpush1.msra.mxu0 0.0
    %440 = vmatprep.subr.mxu0 0.0
    %441 = vmatpush1.msra.mxu0 0.0
    %442 = vmatprep.subr.mxu0 0.0
    %443 = vmatpush1.msra.mxu0 0.0
    %444 = vmatprep.subr.mxu0 0.0
    %445 = vmatpush1.msra.mxu0 0.0
    %446 = vmatprep.subr.mxu0 0.0
    %447 = vmatpush1.msra.mxu0 0.0
    %448 = vmatprep.subr.mxu0 0.0
    %449 = vmatpush1.msra.mxu0 0.0
    %450 = vmatprep.subr.mxu0 0.0
    %451 = vmatpush1.msra.mxu0 0.0
    %452 = vmatprep.subr.mxu0 0.0
    %453 = vmatpush1.msra.mxu0 0.0
    %454 = vmatprep.subr.mxu0 0.0
    %455 = vmatpush1.msra.mxu0 0.0
    %456 = vmatprep.subr.mxu0 0.0
    %457 = vmatpush1.msra.mxu0 0.0
    %458 = vmatprep.subr.mxu0 0.0
    %459 = vmatpush1.msra.mxu0 0.0
    %460 = vmatprep.subr.mxu0 0.0
    %461 = vmatpush1.msra.mxu0 0.0
    %462 = vmatprep.subr.mxu0 0.0
    %463 = vmatpush1.msra.mxu0 0.0
    %464 = vmatprep.subr.mxu0 0.0
    %465 = vmatpush1.msra.mxu0 0.0
    %466 = vmatprep.subr.mxu0 0.0
    %467 = vmatpush1.msra.mxu0 0.0
    %468 = vmatprep.subr.mxu0 0.0
    %469 = vmatpush1.msra.mxu0 0.0
    %470 = vmatprep.subr.mxu0 0.0
    %471 = vmatpush1.msra.mxu0 0.0
    %472 = vmatprep.subr.mxu0 0.0
    %473 = vmatpush1.msra.mxu0 0.0
    %474 = vmatprep.mubr.f32.mxu0 0.0
    %475 = vmatmul.mubr.f32.gmra.mrb[0].mxu0 %v408
    %v476 = vpop.f32.mrb[0].mxu0
    %v477 = vadd.f32 %v406, %v476
    %v478 = vpop.f32.mrb[0].mxu0
    %479 = vdwg.mxu0
    %v480 = vmax.f32 %v477, 0.0
    %s481 = scalar_lea.vmem [#allocation5], 160
    %v482 = vld [vmem:[%s481] sm:$0xff]
    %v483 = vld [vmem:[%s481 + $0x8] sm:$0xff]
    %v484 = vld [vmem:[%s481 + $0x10] sm:$0xff]
    %v485 = vld [vmem:[%s481 + $0x18] sm:$0xff]
    %v486 = vld [vmem:[#allocation7 + $0x5] sm:$0x1]
    %v487 = vlaneseq
    %v488 = vshrl.u32 %v487, 7
    %v489 = vsub.s32 0, %v488
    %v490 = vrot.slane %v486, %v489
    %v492 = vsel %vm54, %v480, 0
    %494 = vmatprep.subr.mxu0 0.0
    %495 = vmatpush1.msra.mxu0 %v482
    %496 = vmatprep.subr.mxu0 0.0
    %497 = vmatpush1.msra.mxu0 %v483
    %498 = vmatprep.subr.mxu0 0.0
    %499 = vmatpush1.msra.mxu0 %v484
    %500 = vmatprep.subr.mxu0 0.0
    %501 = vmatpush1.msra.mxu0 %v485
    %502 = vmatprep.subr.mxu0 0.0
    %503 = vmatpush1.msra.mxu0 0.0
    %504 = vmatprep.subr.mxu0 0.0
    %505 = vmatpush1.msra.mxu0 0.0
    %506 = vmatprep.subr.mxu0 0.0
    %507 = vmatpush1.msra.mxu0 0.0
    %508 = vmatprep.subr.mxu0 0.0
    %509 = vmatpush1.msra.mxu0 0.0
    %510 = vmatprep.subr.mxu0 0.0
    %511 = vmatpush1.msra.mxu0 0.0
    %512 = vmatprep.subr.mxu0 0.0
    %513 = vmatpush1.msra.mxu0 0.0
    %514 = vmatprep.subr.mxu0 0.0
    %515 = vmatpush1.msra.mxu0 0.0
    %516 = vmatprep.subr.mxu0 0.0
    %517 = vmatpush1.msra.mxu0 0.0
    %518 = vmatprep.subr.mxu0 0.0
    %519 = vmatpush1.msra.mxu0 0.0
    %520 = vmatprep.subr.mxu0 0.0
    %521 = vmatpush1.msra.mxu0 0.0
    %522 = vmatprep.subr.mxu0 0.0
    %523 = vmatpush1.msra.mxu0 0.0
    %524 = vmatprep.subr.mxu0 0.0
    %525 = vmatpush1.msra.mxu0 0.0
    %526 = vmatprep.subr.mxu0 0.0
    %527 = vmatpush1.msra.mxu0 0.0
    %528 = vmatprep.subr.mxu0 0.0
    %529 = vmatpush1.msra.mxu0 0.0
    %530 = vmatprep.subr.mxu0 0.0
    %531 = vmatpush1.msra.mxu0 0.0
    %532 = vmatprep.subr.mxu0 0.0
    %533 = vmatpush1.msra.mxu0 0.0
    %534 = vmatprep.subr.mxu0 0.0
    %535 = vmatpush1.msra.mxu0 0.0
    %536 = vmatprep.subr.mxu0 0.0
    %537 = vmatpush1.msra.mxu0 0.0
    %538 = vmatprep.subr.mxu0 0.0
    %539 = vmatpush1.msra.mxu0 0.0
    %540 = vmatprep.subr.mxu0 0.0
    %541 = vmatpush1.msra.mxu0 0.0
    %542 = vmatprep.subr.mxu0 0.0
    %543 = vmatpush1.msra.mxu0 0.0
    %544 = vmatprep.subr.mxu0 0.0
    %545 = vmatpush1.msra.mxu0 0.0
    %546 = vmatprep.subr.mxu0 0.0
    %547 = vmatpush1.msra.mxu0 0.0
    %548 = vmatprep.subr.mxu0 0.0
    %549 = vmatpush1.msra.mxu0 0.0
    %550 = vmatprep.subr.mxu0 0.0
    %551 = vmatpush1.msra.mxu0 0.0
    %552 = vmatprep.subr.mxu0 0.0
    %553 = vmatpush1.msra.mxu0 0.0
    %554 = vmatprep.subr.mxu0 0.0
    %555 = vmatpush1.msra.mxu0 0.0
    %556 = vmatprep.subr.mxu0 0.0
    %557 = vmatpush1.msra.mxu0 0.0
    %558 = vmatprep.mubr.f32.mxu0 0.0
    %559 = vmatmul.mubr.f32.gmra.mrb[0].mxu0 %v492
    %v560 = vpop.f32.mrb[0].mxu0
    %v561 = vadd.f32 %v490, %v560
    %v562 = vpop.f32.mrb[0].mxu0
    %563 = vdwg.mxu0
    %v564 = vmax.f32 %v561, 0.0
    %s565 = scalar_lea.vmem [#allocation5], 192
    %v566 = vld [vmem:[%s565] sm:$0xff]
    %v567 = vld [vmem:[%s565 + $0x8] sm:$0xff]
    %v568 = vld [vmem:[%s565 + $0x10] sm:$0xff]
    %v569 = vld [vmem:[%s565 + $0x18] sm:$0xff]
    %v570 = vld [vmem:[#allocation7 + $0x6] sm:$0x1]
    %v571 = vlaneseq
    %v572 = vshrl.u32 %v571, 7
    %v573 = vsub.s32 0, %v572
    %v574 = vrot.slane %v570, %v573
    %v576 = vsel %vm54, %v564, 0
    %578 = vmatprep.subr.mxu0 0.0
    %579 = vmatpush1.msra.mxu0 %v566
    %580 = vmatprep.subr.mxu0 0.0
    %581 = vmatpush1.msra.mxu0 %v567
    %582 = vmatprep.subr.mxu0 0.0
    %583 = vmatpush1.msra.mxu0 %v568
    %584 = vmatprep.subr.mxu0 0.0
    %585 = vmatpush1.msra.mxu0 %v569
    %586 = vmatprep.subr.mxu0 0.0
    %587 = vmatpush1.msra.mxu0 0.0
    %588 = vmatprep.subr.mxu0 0.0
    %589 = vmatpush1.msra.mxu0 0.0
    %590 = vmatprep.subr.mxu0 0.0
    %591 = vmatpush1.msra.mxu0 0.0
    %592 = vmatprep.subr.mxu0 0.0
    %593 = vmatpush1.msra.mxu0 0.0
    %594 = vmatprep.subr.mxu0 0.0
    %595 = vmatpush1.msra.mxu0 0.0
    %596 = vmatprep.subr.mxu0 0.0
    %597 = vmatpush1.msra.mxu0 0.0
    %598 = vmatprep.subr.mxu0 0.0
    %599 = vmatpush1.msra.mxu0 0.0
    %600 = vmatprep.subr.mxu0 0.0
    %601 = vmatpush1.msra.mxu0 0.0
    %602 = vmatprep.subr.mxu0 0.0
    %603 = vmatpush1.msra.mxu0 0.0
    %604 = vmatprep.subr.mxu0 0.0
    %605 = vmatpush1.msra.mxu0 0.0
    %606 = vmatprep.subr.mxu0 0.0
    %607 = vmatpush1.msra.mxu0 0.0
    %608 = vmatprep.subr.mxu0 0.0
    %609 = vmatpush1.msra.mxu0 0.0
    %610 = vmatprep.subr.mxu0 0.0
    %611 = vmatpush1.msra.mxu0 0.0
    %612 = vmatprep.subr.mxu0 0.0
    %613 = vmatpush1.msra.mxu0 0.0
    %614 = vmatprep.subr.mxu0 0.0
    %615 = vmatpush1.msra.mxu0 0.0
    %616 = vmatprep.subr.mxu0 0.0
    %617 = vmatpush1.msra.mxu0 0.0
    %618 = vmatprep.subr.mxu0 0.0
    %619 = vmatpush1.msra.mxu0 0.0
    %620 = vmatprep.subr.mxu0 0.0
    %621 = vmatpush1.msra.mxu0 0.0
    %622 = vmatprep.subr.mxu0 0.0
    %623 = vmatpush1.msra.mxu0 0.0
    %624 = vmatprep.subr.mxu0 0.0
    %625 = vmatpush1.msra.mxu0 0.0
    %626 = vmatprep.subr.mxu0 0.0
    %627 = vmatpush1.msra.mxu0 0.0
    %628 = vmatprep.subr.mxu0 0.0
    %629 = vmatpush1.msra.mxu0 0.0
    %630 = vmatprep.subr.mxu0 0.0
    %631 = vmatpush1.msra.mxu0 0.0
    %632 = vmatprep.subr.mxu0 0.0
    %633 = vmatpush1.msra.mxu0 0.0
    %634 = vmatprep.subr.mxu0 0.0
    %635 = vmatpush1.msra.mxu0 0.0
    %636 = vmatprep.subr.mxu0 0.0
    %637 = vmatpush1.msra.mxu0 0.0
    %638 = vmatprep.subr.mxu0 0.0
    %639 = vmatpush1.msra.mxu0 0.0
    %640 = vmatprep.subr.mxu0 0.0
    %641 = vmatpush1.msra.mxu0 0.0
    %642 = vmatprep.mubr.f32.mxu0 0.0
    %643 = vmatmul.mubr.f32.gmra.mrb[0].mxu0 %v576
    %v644 = vpop.f32.mrb[0].mxu0
    %v645 = vadd.f32 %v574, %v644
    %v646 = vpop.f32.mrb[0].mxu0
    %647 = vdwg.mxu0
    %v648 = vmax.f32 %v645, 0.0
    %s649 = scalar_lea.vmem [#allocation5], 224
    %v650 = vld [vmem:[%s649] sm:$0xff]
    %v651 = vld [vmem:[%s649 + $0x8] sm:$0xff]
    %v652 = vld [vmem:[%s649 + $0x10] sm:$0xff]
    %v653 = vld [vmem:[%s649 + $0x18] sm:$0xff]
    %v654 = vld [vmem:[#allocation7 + $0x7] sm:$0x1]
    %v655 = vlaneseq
    %v656 = vshrl.u32 %v655, 7
    %v657 = vsub.s32 0, %v656
    %v658 = vrot.slane %v654, %v657
    %v660 = vsel %vm54, %v648, 0
    %662 = vmatprep.subr.mxu0 0.0
    %663 = vmatpush1.msra.mxu0 %v650
    %664 = vmatprep.subr.mxu0 0.0
    %665 = vmatpush1.msra.mxu0 %v651
    %666 = vmatprep.subr.mxu0 0.0
    %667 = vmatpush1.msra.mxu0 %v652
    %668 = vmatprep.subr.mxu0 0.0
    %669 = vmatpush1.msra.mxu0 %v653
    %670 = vmatprep.subr.mxu0 0.0
    %671 = vmatpush1.msra.mxu0 0.0
    %672 = vmatprep.subr.mxu0 0.0
    %673 = vmatpush1.msra.mxu0 0.0
    %674 = vmatprep.subr.mxu0 0.0
    %675 = vmatpush1.msra.mxu0 0.0
    %676 = vmatprep.subr.mxu0 0.0
    %677 = vmatpush1.msra.mxu0 0.0
    %678 = vmatprep.subr.mxu0 0.0
    %679 = vmatpush1.msra.mxu0 0.0
    %680 = vmatprep.subr.mxu0 0.0
    %681 = vmatpush1.msra.mxu0 0.0
    %682 = vmatprep.subr.mxu0 0.0
    %683 = vmatpush1.msra.mxu0 0.0
    %684 = vmatprep.subr.mxu0 0.0
    %685 = vmatpush1.msra.mxu0 0.0
    %686 = vmatprep.subr.mxu0 0.0
    %687 = vmatpush1.msra.mxu0 0.0
    %688 = vmatprep.subr.mxu0 0.0
    %689 = vmatpush1.msra.mxu0 0.0
    %690 = vmatprep.subr.mxu0 0.0
    %691 = vmatpush1.msra.mxu0 0.0
    %692 = vmatprep.subr.mxu0 0.0
    %693 = vmatpush1.msra.mxu0 0.0
    %694 = vmatprep.subr.mxu0 0.0
    %695 = vmatpush1.msra.mxu0 0.0
    %696 = vmatprep.subr.mxu0 0.0
    %697 = vmatpush1.msra.mxu0 0.0
    %698 = vmatprep.subr.mxu0 0.0
    %699 = vmatpush1.msra.mxu0 0.0
    %700 = vmatprep.subr.mxu0 0.0
    %701 = vmatpush1.msra.mxu0 0.0
    %702 = vmatprep.subr.mxu0 0.0
    %703 = vmatpush1.msra.mxu0 0.0
    %704 = vmatprep.subr.mxu0 0.0
    %705 = vmatpush1.msra.mxu0 0.0
    %706 = vmatprep.subr.mxu0 0.0
    %707 = vmatpush1.msra.mxu0 0.0
    %708 = vmatprep.subr.mxu0 0.0
    %709 = vmatpush1.msra.mxu0 0.0
    %710 = vmatprep.subr.mxu0 0.0
    %711 = vmatpush1.msra.mxu0 0.0
    %712 = vmatprep.subr.mxu0 0.0
    %713 = vmatpush1.msra.mxu0 0.0
    %714 = vmatprep.subr.mxu0 0.0
    %715 = vmatpush1.msra.mxu0 0.0
    %716 = vmatprep.subr.mxu0 0.0
    %717 = vmatpush1.msra.mxu0 0.0
    %718 = vmatprep.subr.mxu0 0.0
    %719 = vmatpush1.msra.mxu0 0.0
    %720 = vmatprep.subr.mxu0 0.0
    %721 = vmatpush1.msra.mxu0 0.0
    %722 = vmatprep.subr.mxu0 0.0
    %723 = vmatpush1.msra.mxu0 0.0
    %724 = vmatprep.subr.mxu0 0.0
    %725 = vmatpush1.msra.mxu0 0.0
    %726 = vmatprep.mubr.f32.mxu0 0.0
    %727 = vmatmul.mubr.f32.gmra.mrb[0].mxu0 %v660
    %v728 = vpop.f32.mrb[0].mxu0
    %v729 = vadd.f32 %v658, %v728
    %v730 = vpop.f32.mrb[0].mxu0
    %731 = vdwg.mxu0
    %732 = vst.msk [vmem:[#allocation8] sm:$0xff] %vm54, %v729
    // Predicated region
    $region26: #{tpu_custom_call.1} parent=1 // pred_check
      _
    $region27: #{tpu_custom_call.1} parent=1 // pred_check_branch
      %734 = sbr.rel (0) target = $region29
    $region28: #{tpu_custom_call.1} parent=1 // pred_region
      %s736 = ssub.s32 128, 128
      %737 = vsyncadd [#allocation4], %s736
      %s739 = sshll.u32 [#allocation8], 4
      %s740 = int_to_ptr.vmem [resolvable:$true] %s739
      %742 = dma.vmem_to_hbm [thread:$0]  %s740, 128, %s3, [#allocation4]
    $region29: #{tpu_custom_call.1} parent=1 // pred_fallthru
      _
    // Predicated region
    $region30: #{tpu_custom_call.1} parent=1 // pred_check
      _
    $region31: #{tpu_custom_call.1} parent=1 // pred_check_branch
      %744 = sbr.rel (0) target = $region33
    $region32: #{tpu_custom_call.1} parent=1 // pred_region
      %745 = dma.done [#allocation4], 128
    $region33: #{tpu_custom_call.1} parent=1 // pred_fallthru
      _
    %746 = vsyncpa [#allocation3], 1
    %747 = vsyncpa [#allocation6], 1
    %748 = vsyncpa [#allocation4], 1

</llo_original>
